<compile_context>
chip_gen: v5e
topology: v5e:2x2
jax: 0.10.0
libtpu: 0.0.40
codegen_flags: <defaults>
</compile_context>

<pallas_src>
import functools

import jax
import jax.numpy as jnp
from jax.experimental import pallas as pl
from jax.experimental.pallas import tpu as pltpu

_LANES = 128
_SUBLANES = 8
# 4096 rows * 128 lanes * 4 B = 2 MiB per buffer; 2 in + 2 out, double-buffered
# => ~16 MiB live VMEM.  Fits v6e/v7x scoped defaults; on v5e we raise the
# scoped limit explicitly (physical VMEM is 128 MiB there, 64 MiB on v7x).
_MAX_TILE_ROWS = 4096
_VMEM_LIMIT_BYTES = 32 << 20


def _round_up(x: int, m: int) -> int:
    return ((x + m - 1) // m) * m


def _prog_error_kernel(params_ref, one_cnt_ref, src_ref, pp_ref, pe_ref,
                       *, bipolar: bool):
    # params_ref (SMEM, via scalar prefetch): [cycle, scale]
    cycle = params_ref[0]
    scale = params_ref[1]
    # source preprocessing: clamp(source / scale, -1, 1)
    src = jnp.clip(src_ref[...].astype(jnp.float32) / scale, -1.0, 1.0)
    # pp = one_cnt / cycle  (then *2 - 1 for bipolar) — matches reference order
    pp = one_cnt_ref[...].astype(jnp.float32) / cycle
    if bipolar:
        pp = pp * 2.0 - 1.0
    pp_ref[...] = pp
    pe_ref[...] = pp - src


def prog_error_forward(one_cnt, cycle, source, *, scale=1.0, mode="bipolar"):
    """Compute (pp, pe) like ProgError.forward().

    one_cnt: array, same shape as source (accumulated bit counts; any dtype)
    cycle:   array of shape (1,) (number of Monitor() calls)
    source:  array (raw, un-scaled source data, NCHW or any shape; any dtype)
    scale:   static Python number or traced scalar
    """
    mode = mode.lower()
    assert mode in ("unipolar", "bipolar")
    bipolar = mode == "bipolar"
    orig_shape = source.shape
    total = int(source.size)

    # Keep native dtypes — no wrapper-side upcast copies through HBM.
    oc_flat = one_cnt.reshape(-1)
    src_flat = source.reshape(-1)

    # Lane-dense (rows, 128) slab; pad total only to a multiple of 8*128=1024
    # (<= 1023 elements), so every array row count is a multiple of 8 sublanes.
    padded_total = _round_up(max(total, 1), _SUBLANES * _LANES)
    pad = padded_total - total
    if pad:  # zero for the common NCHW sizes -> no extra HBM pass
        oc_flat = jnp.pad(oc_flat, (0, pad))
        src_flat = jnp.pad(src_flat, (0, pad))
    rows = padded_total // _LANES
    oc2d = oc_flat.reshape(rows, _LANES)
    src2d = src_flat.reshape(rows, _LANES)

    # Tile: as big as allowed, but at least 2 grid blocks when possible so
    # both v7x TensorCores get work; ragged last block is handled by Pallas.
    tile_rows = min(_MAX_TILE_ROWS, max(_SUBLANES,
                                        _round_up(pl.cdiv(rows, 2), _SUBLANES)))
    grid = (pl.cdiv(rows, tile_rows),)

    # Scalars for SMEM: [cycle, scale].  scale may be a traced value.
    cycle_scalar = jnp.asarray(cycle, jnp.float32).reshape(())
    scale_scalar = jnp.asarray(scale, jnp.float32).reshape(())
    params = jnp.stack([cycle_scalar, scale_scalar])

    kernel = functools.partial(_prog_error_kernel, bipolar=bipolar)

    n = padded_total
    in_bytes = oc2d.dtype.itemsize + src2d.dtype.itemsize
    out_bytes = 4 + 4  # pp, pe in float32
    cost = pl.CostEstimate(flops=7 * n, transcendentals=0,
                           bytes_accessed=(in_bytes + out_bytes) * n)

    pp2d, pe2d = pl.pallas_call(
        kernel,
        out_shape=(
            jax.ShapeDtypeStruct((rows, _LANES), jnp.float32),
            jax.ShapeDtypeStruct((rows, _LANES), jnp.float32),
        ),
        grid_spec=pltpu.PrefetchScalarGridSpec(
            num_scalar_prefetch=1,          # params -> SMEM
            grid=grid,
            in_specs=[
                pl.BlockSpec((tile_rows, _LANES), lambda i, params: (i, 0)),
                pl.BlockSpec((tile_rows, _LANES), lambda i, params: (i, 0)),
            ],
            out_specs=(
                pl.BlockSpec((tile_rows, _LANES), lambda i, params: (i, 0)),
                pl.BlockSpec((tile_rows, _LANES), lambda i, params: (i, 0)),
            ),
        ),
        compiler_params=pltpu.CompilerParams(
            dimension_semantics=("parallel",),
            vmem_limit_bytes=_VMEM_LIMIT_BYTES),
        cost_estimate=cost,
    )(params, oc2d, src2d)

    if pad:
        pp = pp2d.reshape(-1)[:total].reshape(orig_shape)
        pe = pe2d.reshape(-1)[:total].reshape(orig_shape)
    else:
        pp = pp2d.reshape(orig_shape)   # free bitcast-style reshape
        pe = pe2d.reshape(orig_shape)
    return pp, pe


def _reference_forward(one_cnt, cycle, source, *, scale=1.0, mode="bipolar"):
    src = jnp.clip(source.astype(jnp.float32) / scale, -1.0, 1.0)
    pp = one_cnt.astype(jnp.float32) / cycle
    if mode == "bipolar":
        pp = pp * 2.0 - 1.0
    return pp, pp - src


if __name__ == "__main__":
    key = jax.random.PRNGKey(0)
    k_src, k_bits = jax.random.split(key)

    B, C, H, W = 2, 4, 16, 16           # NCHW, matches the PyTorch convention
    scale = 1.0
    mode = "bipolar"
    n_cycles = 8

    # Raw source data in [-1, 1] (bipolar range).
    source = jax.random.uniform(k_src, (B, C, H, W), jnp.float32,
                                minval=-1.0, maxval=1.0)

    # Simulate `Monitor()` called n_cycles times with a stochastic bit stream
    # whose ones-density encodes the source in bipolar format.
    prob1 = (jnp.clip(source / scale, -1.0, 1.0) + 1.0) * 0.5
    bits = (jax.random.uniform(k_bits, (n_cycles, B, C, H, W)) < prob1[None])
    one_cnt = bits.astype(jnp.float32).sum(axis=0)           # accumulated 1s
    cycle = jnp.array([float(n_cycles)], dtype=jnp.float32)  # cycle counter

    pp, pe = prog_error_forward(one_cnt, cycle, source, scale=scale, mode=mode)
    pp, pe = jax.block_until_ready((pp, pe))

    pp_ref, pe_ref = _reference_forward(one_cnt, cycle, source,
                                        scale=scale, mode=mode)
    assert pp.shape == (B, C, H, W) and pe.shape == (B, C, H, W)
    assert jnp.allclose(pp, pp_ref, atol=1e-5)
    assert jnp.allclose(pe, pe_ref, atol=1e-5)

    # Also exercise a shape that is NOT a multiple of 1024 (ragged last block).
    src2 = jax.random.uniform(k_src, (3, 5, 7, 11), jnp.float32,
                              minval=-1.0, maxval=1.0)
    oc2 = (jax.random.uniform(k_bits, (n_cycles, 3, 5, 7, 11))
           < ((jnp.clip(src2, -1, 1) + 1) * 0.5)[None]).astype(jnp.float32).sum(0)
    pp2, pe2 = prog_error_forward(oc2, cycle, src2, scale=scale, mode=mode)
    pp2, pe2 = jax.block_until_ready((pp2, pe2))
    pp2_ref, pe2_ref = _reference_forward(oc2, cycle, src2, scale=scale, mode=mode)
    assert jnp.allclose(pp2, pp2_ref, atol=1e-5)
    assert jnp.allclose(pe2, pe2_ref, atol=1e-5)

    print("KERNEL_OK")
</pallas_src>

<mosaic_0001>
module attributes {stable_mosaic.version = 11 : i64} {
  func.func @_prog_error_kernel(%arg0: i32, %arg1: memref<2xf32, #tpu.memory_space<smem>>, %arg2: memref<8x128xf32, #tpu.memory_space<vmem>>, %arg3: memref<8x128xf32, #tpu.memory_space<vmem>>, %arg4: memref<8x128xf32, #tpu.memory_space<vmem>>, %arg5: memref<8x128xf32, #tpu.memory_space<vmem>>) attributes {dimension_semantics = [#tpu.dimension_semantics<parallel>], iteration_bounds = array<i64: 2>, scalar_prefetch = 1 : i64, scratch_operands = 0 : i64, tpu.core_type = #tpu.core_type<tc>, window_params = [{transform_indices = @transform_0, window_bounds = array<i64: 8, 128>}, {transform_indices = @transform_1, window_bounds = array<i64: 8, 128>}, {transform_indices = @transform_2, window_bounds = array<i64: 8, 128>}, {transform_indices = @transform_3, window_bounds = array<i64: 8, 128>}]} {
    %c0 = arith.constant 0 : index
    %0 = memref.load %arg1[%c0] : memref<2xf32, #tpu.memory_space<smem>>
    %c1 = arith.constant 1 : index
    %1 = memref.load %arg1[%c1] : memref<2xf32, #tpu.memory_space<smem>>
    %c0_0 = arith.constant 0 : index
    %c0_1 = arith.constant 0 : index
    %2 = vector.load %arg3[%c0_0, %c0_1] : memref<8x128xf32, #tpu.memory_space<vmem>>, vector<8x128xf32>
    %3 = vector.broadcast %1 : f32 to vector<8x128xf32>
    %4 = arith.divf %2, %3 : vector<8x128xf32>
    %cst = arith.constant -1.000000e+00 : f32
    %cst_2 = arith.constant 1.000000e+00 : f32
    %5 = vector.broadcast %cst : f32 to vector<8x128xf32>
    %6 = arith.maximumf %5, %4 : vector<8x128xf32>
    %7 = vector.broadcast %cst_2 : f32 to vector<8x128xf32>
    %8 = arith.minimumf %7, %6 : vector<8x128xf32>
    %c0_3 = arith.constant 0 : index
    %c0_4 = arith.constant 0 : index
    %9 = vector.load %arg2[%c0_3, %c0_4] : memref<8x128xf32, #tpu.memory_space<vmem>>, vector<8x128xf32>
    %10 = vector.broadcast %0 : f32 to vector<8x128xf32>
    %11 = arith.divf %9, %10 : vector<8x128xf32>
    %cst_5 = arith.constant 2.000000e+00 : f32
    %12 = vector.broadcast %cst_5 : f32 to vector<8x128xf32>
    %13 = arith.mulf %11, %12 : vector<8x128xf32>
    %cst_6 = arith.constant 1.000000e+00 : f32
    %14 = vector.broadcast %cst_6 : f32 to vector<8x128xf32>
    %15 = arith.subf %13, %14 : vector<8x128xf32>
    %c0_7 = arith.constant 0 : index
    %c0_8 = arith.constant 0 : index
    %16 = vector.load %arg4[%c0_7, %c0_8] : memref<8x128xf32, #tpu.memory_space<vmem>>, vector<8x128xf32>
    tpu.vector_store %arg4[%c0_7, %c0_8], %15 {strides = array<i32>} : memref<8x128xf32, #tpu.memory_space<vmem>>, vector<8x128xf32>,
    %17 = arith.subf %15, %8 : vector<8x128xf32>
    %c0_9 = arith.constant 0 : index
    %c0_10 = arith.constant 0 : index
    %18 = vector.load %arg5[%c0_9, %c0_10] : memref<8x128xf32, #tpu.memory_space<vmem>>, vector<8x128xf32>
    tpu.vector_store %arg5[%c0_9, %c0_10], %17 {strides = array<i32>} : memref<8x128xf32, #tpu.memory_space<vmem>>, vector<8x128xf32>,
    return
  }
  func.func @transform_0(%arg0: i32, %arg1: memref<2xf32, #tpu.memory_space<smem>>) -> (i32, i32) {
    %c0_i32 = arith.constant 0 : i32
    %c0_i32_0 = arith.constant 0 : i32
    return %arg0, %c0_i32 : i32, i32
  }
  func.func @transform_1(%arg0: i32, %arg1: memref<2xf32, #tpu.memory_space<smem>>) -> (i32, i32) {
    %c0_i32 = arith.constant 0 : i32
    %c0_i32_0 = arith.constant 0 : i32
    return %arg0, %c0_i32 : i32, i32
  }
  func.func @transform_2(%arg0: i32, %arg1: memref<2xf32, #tpu.memory_space<smem>>) -> (i32, i32) {
    %c0_i32 = arith.constant 0 : i32
    %c0_i32_0 = arith.constant 0 : i32
    return %arg0, %c0_i32 : i32, i32
  }
  func.func @transform_3(%arg0: i32, %arg1: memref<2xf32, #tpu.memory_space<smem>>) -> (i32, i32) {
    %c0_i32 = arith.constant 0 : i32
    %c0_i32_0 = arith.constant 0 : i32
    return %arg0, %c0_i32 : i32, i32
  }
}

</mosaic_0001>

<llo_original>
// kernel: tpu_custom_call.1
$region0: #{tpu_custom_call.1}
  #allocation0 [shape = 'u32[]', space=smem, size = 0x4, offset = 0x4, fixed_abs, tag = 'smem constant byte address 0x4 - core index']
  #allocation1 [shape = 'u32[72,128]{1,0:T(1,128)}', space=vmem, size = 0x9000, scoped, tag = 'internal scratch']
  #allocation2 [shape = 's32[1]{0}', space=sflag, size = 0x4, scoped, tag = 'scoped memory for tpu_custom_call.1']
  #allocation3 [shape = 'u8[512]{0}', space=smem, size = 0x200, scoped, tag = 'prefetched SMEM operand 0']
  %s0 = inlined_call_operand.hbm [shape: f32[2], index: 0, kind: input, shape index: {}]
  %s1 = inlined_call_operand.hbm [shape: f32[16,128], index: 1, kind: input, shape index: {}]
  %s2 = inlined_call_operand.hbm [shape: f32[16,128], index: 2, kind: input, shape index: {}]
  %s3 = inlined_call_operand.hbm [shape: f32[16,128], index: 3, kind: output, shape index: {0}]
  %s4 = inlined_call_operand.hbm [shape: f32[16,128], index: 4, kind: output, shape index: {1}]
  %5 = xla_tuple %s3, %s4
  %s6 = sld [smem:[#allocation0]]
  $region57: #{tpu_custom_call.1} parent=0
    _
  %s8 = ssub.s32 1, %s6
  %s9 = scalar_select 0, %s8, %s6
  %s11 = sshll.u32 %s0, 4
  %s12 = int_to_ptr.hbm [resolvable:$true] %s11
  %14 = dma.hbm_to_smem %s12, 16, [#allocation3], [#allocation2]
  %16 = dma.done [#allocation2], 16
  %17 = sfence
  $region1: #{tpu_custom_call.1} parent=0
    #allocation4 [shape = 'u8[8192]{0}', space=vmem, size = 0x2000, scoped, tag = 'input window, operand 1']
    #allocation5 [shape = 's32[2]{0}', space=sflag, size = 0x8, scoped, tag = 'scoped memory for tpu_custom_call.1']
    #allocation6 [shape = 's32[2]{0}', space=sflag, size = 0x8, scoped, tag = 'scoped memory for tpu_custom_call.1']
    #allocation7 [shape = 'u8[8192]{0}', space=vmem, size = 0x2000, scoped, tag = 'input window, operand 2']
    #allocation8 [shape = 's32[2]{0}', space=sflag, size = 0x8, scoped, tag = 'scoped memory for tpu_custom_call.1']
    #allocation9 [shape = 'u8[8192]{0}', space=vmem, size = 0x2000, scoped, tag = 'output window, operand 0']
    #allocation10 [shape = 'u8[8192]{0}', space=vmem, size = 0x2000, scoped, tag = 'output window, operand 1']
    #allocation11 [shape = 's32[2]{0}', space=sflag, size = 0x8, scoped, tag = 'scoped memory for tpu_custom_call.1']
    %18 = vsyncpa [#allocation5], 0
    %s19 = scalar_lea.sflag [#allocation5], 1
    %20 = vsyncpa %s19, 0
    %21 = vsyncpa [#allocation8], 0
    %s22 = scalar_lea.sflag [#allocation8], 1
    %23 = vsyncpa %s22, 0
    %24 = vsyncpa [#allocation6], 0
    %s25 = scalar_lea.sflag [#allocation6], 1
    %26 = vsyncpa %s25, 0
    %27 = vsyncpa [#allocation11], 0
    %s28 = scalar_lea.sflag [#allocation11], 1
    %29 = vsyncpa %s28, 0
    loop: start=0, step=1, limit=4
    $region2: #{tpu_custom_call.1} parent=1 // loop_pre_header
      _
    $region3: #{tpu_custom_call.1} parent=1 // loop_header
      %s31 = sphi 0, %s35
      %p32 = scmp.ge.s32.totalorder %s31, 4
      %s41 = sphi 0, %s43
      %s44 = sphi 0, %s41
      %s45 = sphi 0, %s44
      %s61 = sphi 0, %s45
      %s67 = sphi 0, %s69
      %s70 = sphi 0, %s67
      %s71 = sphi 0, %s70
      %s87 = sphi 0, %s71
      %s93 = sphi 0, %s95
      %s96 = sphi 0, %s93
      %s97 = sphi 0, %s96
      %s113 = sphi 0, %s97
      %s119 = sphi 0, %s121
      %s122 = sphi 0, %s119
      %s123 = sphi 0, %s122
      %s139 = sphi 0, %s123
    $region4: #{tpu_custom_call.1} parent=1 // loop_header_branch
      %34 = sbr.rel (%p32) target = $region8
    $region5: #{tpu_custom_call.1} parent=1 // loop_body
      %s36 = ssub.s32 %s31, 1
      %s37 = ssub.s32 %s31, 2
      %s38 = sadd.s32 %s31, 1
      %s39 = ssub.s32 %s31, %s38
      %p40 = scmp.eq.s32.totalorder %s39, 0
      %s42 = sadd.s32 %s41, 1
      %s43 = scalar_select %p40, %s41, %s42
      %p46 = pneg %p40
      %p47 = scmp.eq.s32.totalorder %s31, 1
      %p48 = por %p46, %p47
      %p49 = scmp.ne.s32.totalorder %s41, %s44
      %p50 = scmp.eq.s32.totalorder %s31, 0
      %p51 = por %p49, %p50
      %p52 = scmp.ne.s32.totalorder %s41, %s44
      %p53 = scmp.eq.s32.totalorder %s36, 1
      %p54 = por %p52, %p53
      %p55 = scmp.ne.s32.totalorder %s44, %s45
      %p56 = scmp.eq.s32.totalorder %s36, 0
      %p57 = por %p55, %p56
      %p58 = scmp.ne.s32.totalorder %s44, %s45
      %p59 = scmp.eq.s32.totalorder %s37, 1
      %p60 = por %p58, %p59
      %p62 = scmp.ne.s32.totalorder %s45, %s61
      %p63 = scmp.eq.s32.totalorder %s37, 0
      %p64 = por %p62, %p63
      %s65 = ssub.s32 %s31, %s38
      %p66 = scmp.eq.s32.totalorder %s65, 0
      %s68 = sadd.s32 %s67, 1
      %s69 = scalar_select %p66, %s67, %s68
      %p72 = pneg %p66
      %p73 = scmp.eq.s32.totalorder %s31, 1
      %p74 = por %p72, %p73
      %p75 = scmp.ne.s32.totalorder %s67, %s70
      %p76 = scmp.eq.s32.totalorder %s31, 0
      %p77 = por %p75, %p76
      %p78 = scmp.ne.s32.totalorder %s67, %s70
      %p79 = scmp.eq.s32.totalorder %s36, 1
      %p80 = por %p78, %p79
      %p81 = scmp.ne.s32.totalorder %s70, %s71
      %p82 = scmp.eq.s32.totalorder %s36, 0
      %p83 = por %p81, %p82
      %p84 = scmp.ne.s32.totalorder %s70, %s71
      %p85 = scmp.eq.s32.totalorder %s37, 1
      %p86 = por %p84, %p85
      %p88 = scmp.ne.s32.totalorder %s71, %s87
      %p89 = scmp.eq.s32.totalorder %s37, 0
      %p90 = por %p88, %p89
      %s91 = ssub.s32 %s31, %s38
      %p92 = scmp.eq.s32.totalorder %s91, 0
      %s94 = sadd.s32 %s93, 1
      %s95 = scalar_select %p92, %s93, %s94
      %p98 = pneg %p92
      %p99 = scmp.eq.s32.totalorder %s31, 1
      %p100 = por %p98, %p99
      %p101 = scmp.ne.s32.totalorder %s93, %s96
      %p102 = scmp.eq.s32.totalorder %s31, 0
      %p103 = por %p101, %p102
      %p104 = scmp.ne.s32.totalorder %s93, %s96
      %p105 = scmp.eq.s32.totalorder %s36, 1
      %p106 = por %p104, %p105
      %p107 = scmp.ne.s32.totalorder %s96, %s97
      %p108 = scmp.eq.s32.totalorder %s36, 0
      %p109 = por %p107, %p108
      %p110 = scmp.ne.s32.totalorder %s96, %s97
      %p111 = scmp.eq.s32.totalorder %s37, 1
      %p112 = por %p110, %p111
      %p114 = scmp.ne.s32.totalorder %s97, %s113
      %p115 = scmp.eq.s32.totalorder %s37, 0
      %p116 = por %p114, %p115
      %s117 = ssub.s32 %s31, %s38
      %p118 = scmp.eq.s32.totalorder %s117, 0
      %s120 = sadd.s32 %s119, 1
      %s121 = scalar_select %p118, %s119, %s120
      %p124 = pneg %p118
      %p125 = scmp.eq.s32.totalorder %s31, 1
      %p126 = por %p124, %p125
      %p127 = scmp.ne.s32.totalorder %s119, %s122
      %p128 = scmp.eq.s32.totalorder %s31, 0
      %p129 = por %p127, %p128
      %p130 = scmp.ne.s32.totalorder %s119, %s122
      %p131 = scmp.eq.s32.totalorder %s36, 1
      %p132 = por %p130, %p131
      %p133 = scmp.ne.s32.totalorder %s122, %s123
      %p134 = scmp.eq.s32.totalorder %s36, 0
      %p135 = por %p133, %p134
      %p136 = scmp.ne.s32.totalorder %s122, %s123
      %p137 = scmp.eq.s32.totalorder %s37, 1
      %p138 = por %p136, %p137
      %p140 = scmp.ne.s32.totalorder %s123, %s139
      %p141 = scmp.eq.s32.totalorder %s37, 0
      %p142 = por %p140, %p141
      %p143 = scmp.le.s32.totalorder 1, %s31
      %p144 = scmp.lt.s32.totalorder %s31, 3
      %p145 = pnand %p143, %p144
      %p146 = pneg %p145
      // Predicated region
      $region9: #{tpu_custom_call.1} parent=5 // pred_check
        _
      $region10: #{tpu_custom_call.1} parent=5 // pred_check_branch
        %148 = sbr.rel (%p145) target = $region12
      $region11: #{tpu_custom_call.1} parent=5 // pred_region
        %s149 = ssub.s32 %s31, 1
      $region12: #{tpu_custom_call.1} parent=5 // pred_fallthru
        _
      %p150 = scmp.lt.s32.totalorder %s31, 2
      // Predicated region
      $region13: #{tpu_custom_call.1} parent=5 // pred_check
        %p151 = pneg %p150
      $region14: #{tpu_custom_call.1} parent=5 // pred_check_branch
        %153 = sbr.rel (%p151) target = $region16
      $region15: #{tpu_custom_call.1} parent=5 // pred_region
        // Predicated region
        $region17: #{tpu_custom_call.1} parent=15 // pred_check
          %p154 = pneg %p51
        $region18: #{tpu_custom_call.1} parent=15 // pred_check_branch
          %156 = sbr.rel (%p154) target = $region20
        $region19: #{tpu_custom_call.1} parent=15 // pred_region
          %s157 = sand.u32 %s41, 1
          %s158 = scalar_lea.sflag [#allocation5], %s157
          %s159 = sand.u32 %s41, 1
          %s160 = smul.addr %s159, 8
          %s161 = scalar_lea.vmem [#allocation4], %s160
          %163 = vsyncadd %s158, 0
          %s164 = smul.addr %s31, 8
          %s165 = scalar_lea.hbm %s1, %s164
          %s167 = sshll.u32 %s165, 4
          %s168 = int_to_ptr.hbm [resolvable:$true] %s167
          %s169 = sshll.u32 %s161, 4
          %s170 = int_to_ptr.vmem [resolvable:$true] %s169
          %172 = dma.hbm_to_vmem [thread:$0]  %s168, 128, %s170, %s158
        $region20: #{tpu_custom_call.1} parent=15 // pred_fallthru
          _
        // Predicated region
        $region21: #{tpu_custom_call.1} parent=15 // pred_check
          %p173 = pneg %p77
        $region22: #{tpu_custom_call.1} parent=15 // pred_check_branch
          %175 = sbr.rel (%p173) target = $region24
        $region23: #{tpu_custom_call.1} parent=15 // pred_region
          %s176 = sand.u32 %s67, 1
          %s177 = scalar_lea.sflag [#allocation8], %s176
          %s178 = sand.u32 %s67, 1
          %s179 = smul.addr %s178, 8
          %s180 = scalar_lea.vmem [#allocation7], %s179
          %182 = vsyncadd %s177, 0
          %s183 = smul.addr %s31, 8
          %s184 = scalar_lea.hbm %s2, %s183
          %s186 = sshll.u32 %s184, 4
          %s187 = int_to_ptr.hbm [resolvable:$true] %s186
          %s188 = sshll.u32 %s180, 4
          %s189 = int_to_ptr.vmem [resolvable:$true] %s188
          %191 = dma.hbm_to_vmem [thread:$0]  %s187, 128, %s189, %s177
        $region24: #{tpu_custom_call.1} parent=15 // pred_fallthru
          _
      $region16: #{tpu_custom_call.1} parent=5 // pred_fallthru
        _
      %p192 = scmp.le.s32.totalorder 1, %s31
      %p193 = scmp.lt.s32.totalorder %s31, 3
      %p194 = pnand %p192, %p193
      %p195 = pneg %p194
      // Predicated region
      $region25: #{tpu_custom_call.1} parent=5 // pred_check
        _
      $region26: #{tpu_custom_call.1} parent=5 // pred_check_branch
        %197 = sbr.rel (%p194) target = $region28
      $region27: #{tpu_custom_call.1} parent=5 // pred_region
        %s198 = ssub.s32 %s31, 1
        %s199 = sand.u32 %s44, 1
        %s200 = scalar_lea.sflag [#allocation5], %s199
        %s201 = sand.u32 %s44, 1
        %s202 = smul.addr %s201, 8
        %s203 = scalar_lea.vmem [#allocation4], %s202
        // Predicated region
        $region29: #{tpu_custom_call.1} parent=27 // pred_check
          %p204 = pneg %p57
        $region30: #{tpu_custom_call.1} parent=27 // pred_check_branch
          %206 = sbr.rel (%p204) target = $region32
        $region31: #{tpu_custom_call.1} parent=27 // pred_region
          %208 = dma.done %s200, 128
        $region32: #{tpu_custom_call.1} parent=27 // pred_fallthru
          _
        %s209 = sand.u32 %s70, 1
        %s210 = scalar_lea.sflag [#allocation8], %s209
        %s211 = sand.u32 %s70, 1
        %s212 = smul.addr %s211, 8
        %s213 = scalar_lea.vmem [#allocation7], %s212
        // Predicated region
        $region33: #{tpu_custom_call.1} parent=27 // pred_check
          %p214 = pneg %p83
        $region34: #{tpu_custom_call.1} parent=27 // pred_check_branch
          %216 = sbr.rel (%p214) target = $region36
        $region35: #{tpu_custom_call.1} parent=27 // pred_region
          %218 = dma.done %s210, 128
        $region36: #{tpu_custom_call.1} parent=27 // pred_fallthru
          _
        %s219 = sand.u32 %s44, 1
        %s220 = scalar_lea.sflag [#allocation5], %s219
        %s221 = sand.u32 %s44, 1
        %s222 = smul.addr %s221, 8
        %s223 = scalar_lea.vmem [#allocation4], %s222
        %p224 = pneg %p57
        %p225 = pneg %p54
        %s226 = sand.u32 %s70, 1
        %s227 = scalar_lea.sflag [#allocation8], %s226
        %s228 = sand.u32 %s70, 1
        %s229 = smul.addr %s228, 8
        %s230 = scalar_lea.vmem [#allocation7], %s229
        %p231 = pneg %p83
        %p232 = pneg %p80
        %p233 = pneg %p109
        %p234 = pneg %p106
        %s235 = sand.u32 %s96, 1
        %s236 = scalar_lea.sflag [#allocation6], %s235
        %s237 = sand.u32 %s96, 1
        %s238 = smul.addr %s237, 8
        %s239 = scalar_lea.vmem [#allocation9], %s238
        %p240 = pneg %p135
        %p241 = pneg %p132
        %s242 = sand.u32 %s122, 1
        %s243 = scalar_lea.sflag [#allocation11], %s242
        %s244 = sand.u32 %s122, 1
        %s245 = smul.addr %s244, 8
        %s246 = scalar_lea.vmem [#allocation10], %s245
        %s247 = sld [smem:[#allocation3]]
        %s248 = sld [smem:[#allocation3 + $0x1]]
        %v249 = vld [vmem:[%s213] sm:$0xff]
        %v250 = vstv %s248
        %v251 = vrcp.pop %v250
        %v252 = vmul.f32 %v250, %v251
        %v253 = vsub.f32 1.0, %v252
        %v254 = vmul.f32 %v251, %v253
        %v255 = vadd.f32 %v251, %v254
        %vm256 = vweird.f32 %v250
        %vm257 = vweird.f32 %v251
        %vm258 = vmor %vm256, %vm257
        %v259 = vsel %vm258, %v251, %v255
        %v260 = vand.u32 2147483647, %v250
        %vm261 = vcmp.eq.f32.partialorder %v260, 8.507059e+37
        %v262 = vand.u32 %v250, 2147483648
        %v263 = vor.u32 1.1754944e-38, %v262
        %v264 = vsel %vm261, %v263, %v259
        %v265 = vmul.f32 %v249, %v264
        %v266 = vmax.f32 %v265, -1.0
        %v267 = vmin.f32 %v266, 1.0
        %v268 = vld [vmem:[%s203] sm:$0xff]
        %v269 = vstv %s247
        %v270 = vrcp.pop %v269
        %v271 = vmul.f32 %v269, %v270
        %v272 = vsub.f32 1.0, %v271
        %v273 = vmul.f32 %v270, %v272
        %v274 = vadd.f32 %v270, %v273
        %vm275 = vweird.f32 %v269
        %vm276 = vweird.f32 %v270
        %vm277 = vmor %vm275, %vm276
        %v278 = vsel %vm277, %v270, %v274
        %v279 = vand.u32 2147483647, %v269
        %vm280 = vcmp.eq.f32.partialorder %v279, 8.507059e+37
        %v281 = vand.u32 %v269, 2147483648
        %v282 = vor.u32 1.1754944e-38, %v281
        %v283 = vsel %vm280, %v282, %v278
        %v284 = vmul.f32 %v268, %v283
        %v285 = vmul.f32 %v284, 2.0
        %v286 = vsub.f32 %v285, 1.0
        %287 = vst [vmem:[%s239] sm:$0xff] %v286
        %v288 = vsub.f32 %v286, %v267
        %289 = vst [vmem:[%s246] sm:$0xff] %v288
        %s290 = sand.u32 %s96, 1
        %s291 = scalar_lea.sflag [#allocation6], %s290
        %s292 = sand.u32 %s96, 1
        %s293 = smul.addr %s292, 8
        %s294 = scalar_lea.vmem [#allocation9], %s293
        %s295 = sand.u32 %s122, 1
        %s296 = scalar_lea.sflag [#allocation11], %s295
        %s297 = sand.u32 %s122, 1
        %s298 = smul.addr %s297, 8
        %s299 = scalar_lea.vmem [#allocation10], %s298
        // Predicated region
        $region37: #{tpu_custom_call.1} parent=27 // pred_check
          %p300 = pneg %p106
        $region38: #{tpu_custom_call.1} parent=27 // pred_check_branch
          %302 = sbr.rel (%p300) target = $region40
        $region39: #{tpu_custom_call.1} parent=27 // pred_region
          %304 = vsyncadd %s291, 0
          %s305 = smul.addr %s36, 8
          %s306 = scalar_lea.hbm %s3, %s305
          %s308 = sshll.u32 %s294, 4
          %s309 = int_to_ptr.vmem [resolvable:$true] %s308
          %s310 = sshll.u32 %s306, 4
          %s311 = int_to_ptr.hbm [resolvable:$true] %s310
          %313 = dma.vmem_to_hbm [thread:$0]  %s309, 128, %s311, %s291
        $region40: #{tpu_custom_call.1} parent=27 // pred_fallthru
          _
        // Predicated region
        $region41: #{tpu_custom_call.1} parent=27 // pred_check
          %p314 = pneg %p132
        $region42: #{tpu_custom_call.1} parent=27 // pred_check_branch
          %316 = sbr.rel (%p314) target = $region44
        $region43: #{tpu_custom_call.1} parent=27 // pred_region
          %318 = vsyncadd %s296, 0
          %s319 = smul.addr %s36, 8
          %s320 = scalar_lea.hbm %s4, %s319
          %s322 = sshll.u32 %s299, 4
          %s323 = int_to_ptr.vmem [resolvable:$true] %s322
          %s324 = sshll.u32 %s320, 4
          %s325 = int_to_ptr.hbm [resolvable:$true] %s324
          %327 = dma.vmem_to_hbm [thread:$0]  %s323, 128, %s325, %s296
        $region44: #{tpu_custom_call.1} parent=27 // pred_fallthru
          _
      $region28: #{tpu_custom_call.1} parent=5 // pred_fallthru
        _
      %p328 = scmp.le.s32.totalorder 2, %s31
      // Predicated region
      $region45: #{tpu_custom_call.1} parent=5 // pred_check
        %p329 = pneg %p328
      $region46: #{tpu_custom_call.1} parent=5 // pred_check_branch
        %331 = sbr.rel (%p329) target = $region48
      $region47: #{tpu_custom_call.1} parent=5 // pred_region
        %s332 = ssub.s32 %s31, 2
        // Predicated region
        $region49: #{tpu_custom_call.1} parent=47 // pred_check
          %p333 = pneg %p112
        $region50: #{tpu_custom_call.1} parent=47 // pred_check_branch
          %335 = sbr.rel (%p333) target = $region52
        $region51: #{tpu_custom_call.1} parent=47 // pred_region
          %s336 = sand.u32 %s97, 1
          %s337 = scalar_lea.sflag [#allocation6], %s336
          %s338 = sand.u32 %s97, 1
          %s339 = smul.addr %s338, 8
          %s340 = scalar_lea.vmem [#allocation9], %s339
          %342 = dma.done %s337, 128
        $region52: #{tpu_custom_call.1} parent=47 // pred_fallthru
          _
        // Predicated region
        $region53: #{tpu_custom_call.1} parent=47 // pred_check
          %p343 = pneg %p138
        $region54: #{tpu_custom_call.1} parent=47 // pred_check_branch
          %345 = sbr.rel (%p343) target = $region56
        $region55: #{tpu_custom_call.1} parent=47 // pred_region
          %s346 = sand.u32 %s123, 1
          %s347 = scalar_lea.sflag [#allocation11], %s346
          %s348 = sand.u32 %s123, 1
          %s349 = smul.addr %s348, 8
          %s350 = scalar_lea.vmem [#allocation10], %s349
          %352 = dma.done %s347, 128
        $region56: #{tpu_custom_call.1} parent=47 // pred_fallthru
          _
      $region48: #{tpu_custom_call.1} parent=5 // pred_fallthru
        _
    $region6: #{tpu_custom_call.1} parent=1 // loop_footer
      %s35 = sadd.s32 1, %s31
    $region7: #{tpu_custom_call.1} parent=1 // loop_footer_branch
      %30 = sbr.rel target = $region3
    $region8: #{tpu_custom_call.1} parent=1 // loop_exit
      _
    %353 = vsyncpa [#allocation5], 1
    %s354 = scalar_lea.sflag [#allocation5], 1
    %355 = vsyncpa %s354, 1
    %356 = vsyncpa [#allocation8], 1
    %s357 = scalar_lea.sflag [#allocation8], 1
    %358 = vsyncpa %s357, 1
    %359 = vsyncpa [#allocation6], 1
    %s360 = scalar_lea.sflag [#allocation6], 1
    %361 = vsyncpa %s360, 1
    %362 = vsyncpa [#allocation11], 1
    %s363 = scalar_lea.sflag [#allocation11], 1
    %364 = vsyncpa %s363, 1

</llo_original>
